<compile_context>
chip_gen: v7x
topology: tpu7x:2x2x1
jax: 0.10.0
libtpu: 0.0.40
codegen_flags: <defaults>
</compile_context>

<pallas_src>
import jax
import jax.numpy as jnp
from jax import lax
from jax.experimental import pallas as pl
from jax.experimental.pallas import tpu as pltpu

EPS = 1e-5


def _round_up(x, m):
    return ((x + m - 1) // m) * m


# ----------------------------------------------------------------------------
# Pallas kernels: tiled matmul with K-accumulation + fused BN/residual/ReLU
# ----------------------------------------------------------------------------
def _mm_bn_mask_kernel(p_ref, w_ref, b_ref, m_ref, o_ref, acc_ref):
    """out = (P @ W) + bias; ReLU applied only on columns where mask > 0."""

    @pl.when(pl.program_id(2) == 0)
    def _():
        acc_ref[...] = jnp.zeros_like(acc_ref)

    acc_ref[...] += jnp.dot(p_ref[...], w_ref[...],
                            preferred_element_type=jnp.float32)

    @pl.when(pl.program_id(2) == pl.num_programs(2) - 1)
    def _():
        out = acc_ref[...] + b_ref[...]
        out = jnp.where(m_ref[...] > 0.0, jnp.maximum(out, 0.0), out)
        o_ref[...] = out.astype(o_ref.dtype)


def _mm_bn_res_kernel(p_ref, w_ref, b_ref, r_ref, o_ref, acc_ref):
    """out = relu((P @ W) + bias + residual)."""

    @pl.when(pl.program_id(2) == 0)
    def _():
        acc_ref[...] = jnp.zeros_like(acc_ref)

    acc_ref[...] += jnp.dot(p_ref[...], w_ref[...],
                            preferred_element_type=jnp.float32)

    @pl.when(pl.program_id(2) == pl.num_programs(2) - 1)
    def _():
        out = acc_ref[...] + b_ref[...] + r_ref[...]
        o_ref[...] = jnp.maximum(out, 0.0).astype(o_ref.dtype)


def _pick_tiles(M, K):
    tm = 256 if M >= 256 else _round_up(M, 16)
    tn = 128                                    # lane-dense output stores
    k16 = _round_up(K, 16)
    tk = k16 if k16 <= 1024 else 512            # single K block when K is small
    return tm, tk, tn


def fused_conv_matmul(patches, w_scaled, bias, *, relu_cols=None, residual=None):
    """Tiled bf16 matmul with fused BN-bias / residual / ReLU epilogue.

    patches:   (M, K) f32  im2col activation patches
    w_scaled:  (K, N) f32  conv weights with BN scale folded into columns
    bias:      (N,)   f32  folded BN bias
    relu_cols: (N,)   bool per-column ReLU mask (used when residual is None)
    residual:  (M, N) f32  added before a full ReLU
    returns    (M, N) f32
    """
    M, K = patches.shape
    N = w_scaled.shape[1]
    tm, tk, tn = _pick_tiles(M, K)
    Mp, Kp, Np = _round_up(M, tm), _round_up(K, tk), _round_up(N, tn)

    p = jnp.zeros((Mp, Kp), jnp.bfloat16).at[:M, :K].set(
        patches.astype(jnp.bfloat16))
    w = jnp.zeros((Kp, Np), jnp.bfloat16).at[:K, :N].set(
        w_scaled.astype(jnp.bfloat16))
    b = jnp.zeros((1, Np), jnp.float32).at[0, :N].set(bias)

    grid = (Mp // tm, Np // tn, Kp // tk)
    lhs_spec = pl.BlockSpec((tm, tk), lambda i, j, k: (i, k))
    rhs_spec = pl.BlockSpec((tk, tn), lambda i, j, k: (k, j))
    row_spec = pl.BlockSpec((1, tn), lambda i, j, k: (0, j))
    out_spec = pl.BlockSpec((tm, tn), lambda i, j, k: (i, j))

    common = dict(
        out_shape=jax.ShapeDtypeStruct((Mp, Np), jnp.float32),
        grid=grid,
        out_specs=out_spec,
        scratch_shapes=[pltpu.VMEM((tm, tn), jnp.float32)],
        compiler_params=pltpu.CompilerParams(
            dimension_semantics=("parallel", "parallel", "arbitrary")),
    )

    if residual is None:
        mask = jnp.zeros((1, Np), jnp.float32).at[0, :N].set(
            relu_cols.astype(jnp.float32))
        out = pl.pallas_call(
            _mm_bn_mask_kernel,
            in_specs=[lhs_spec, rhs_spec, row_spec, row_spec],
            **common,
        )(p, w, b, mask)
    else:
        r = jnp.zeros((Mp, Np), jnp.float32).at[:M, :N].set(residual)
        res_spec = pl.BlockSpec((tm, tn), lambda i, j, k: (i, j))
        out = pl.pallas_call(
            _mm_bn_res_kernel,
            in_specs=[lhs_spec, rhs_spec, row_spec, res_spec],
            **common,
        )(p, w, b, r)

    return out[:M, :N]


# ----------------------------------------------------------------------------
# Glue: im2col, BN folding, parameter setup
# ----------------------------------------------------------------------------
def im2col_3x3(x_nhwc, stride):
    N, H, W, C = x_nhwc.shape
    xp = jnp.pad(x_nhwc, ((0, 0), (1, 1), (1, 1), (0, 0)))
    Ho = (H + 2 - 3) // stride + 1
    Wo = (W + 2 - 3) // stride + 1
    cols = []
    for kh in range(3):
        for kw in range(3):
            cols.append(xp[:,
                           kh:kh + (Ho - 1) * stride + 1:stride,
                           kw:kw + (Wo - 1) * stride + 1:stride, :])
    patches = jnp.stack(cols, axis=3)            # (N, Ho, Wo, 9, C)
    return patches.reshape(N * Ho * Wo, 9 * C), (N, Ho, Wo)


def fold_bn(gamma, beta, mean, var):
    scale = gamma / jnp.sqrt(var + EPS)
    bias = beta - mean * scale
    return scale, bias


def init_basic_block_params(key, in_planes, planes, stride):
    ks = jax.random.split(key, 16)
    p = {}
    p["w1"] = 0.1 * jax.random.normal(ks[0], (planes, in_planes, 3, 3), jnp.float32)
    p["w2"] = 0.1 * jax.random.normal(ks[1], (planes, planes, 3, 3), jnp.float32)
    for i, name in enumerate(["bn1", "bn2"]):
        p[name] = dict(
            gamma=jax.random.uniform(ks[2 + 4 * i], (planes,), jnp.float32, 0.5, 1.5),
            beta=0.1 * jax.random.normal(ks[3 + 4 * i], (planes,), jnp.float32),
            mean=0.1 * jax.random.normal(ks[4 + 4 * i], (planes,), jnp.float32),
            var=jax.random.uniform(ks[5 + 4 * i], (planes,), jnp.float32, 0.5, 1.5),
        )
    p["has_shortcut"] = (stride != 1) or (in_planes != planes)
    if p["has_shortcut"]:
        p["ws"] = 0.1 * jax.random.normal(ks[10], (planes, in_planes, 1, 1), jnp.float32)
        p["bns"] = dict(
            gamma=jax.random.uniform(ks[11], (planes,), jnp.float32, 0.5, 1.5),
            beta=0.1 * jax.random.normal(ks[12], (planes,), jnp.float32),
            mean=0.1 * jax.random.normal(ks[13], (planes,), jnp.float32),
            var=jax.random.uniform(ks[14], (planes,), jnp.float32, 0.5, 1.5),
        )
    return p


def basic_block_forward(x_nchw, params, stride):
    """x_nchw: (N, Cin, H, W) f32 -> (N, planes, Ho, Wo) f32."""
    x_nhwc = jnp.transpose(x_nchw, (0, 2, 3, 1))
    N, H, W, Cin = x_nhwc.shape
    planes = params["w1"].shape[0]

    # ---- conv1 + bn1 + relu (shortcut fused into the same pallas_call) ----
    patches1, (n, Ho, Wo) = im2col_3x3(x_nhwc, stride)
    M = n * Ho * Wo
    w1 = jnp.transpose(params["w1"], (2, 3, 1, 0)).reshape(9 * Cin, planes)
    s1, b1 = fold_bn(**params["bn1"])
    w1s = w1 * s1[None, :]

    if params["has_shortcut"]:
        ws = params["ws"].reshape(planes, Cin).T              # (Cin, planes)
        ss, bs = fold_bn(**params["bns"])
        ws_s = ws * ss[None, :]
        # The centre tap (kh=kw=1) of the padded 3x3 im2col patches is exactly
        # the stride-s subsampled input the 1x1 shortcut conv reads, so the
        # shortcut matmul shares the conv1 LHS tile: embed its (scaled) weight
        # into the centre-tap rows of a concatenated weight matrix.
        ws_full = jnp.zeros((9 * Cin, planes), jnp.float32).at[
            4 * Cin:5 * Cin, :].set(ws_s)
        w_cat = jnp.concatenate([w1s, ws_full], axis=1)       # (9*Cin, 2*planes)
        b_cat = jnp.concatenate([b1, bs])
        relu_cols = jnp.concatenate(
            [jnp.ones((planes,), bool), jnp.zeros((planes,), bool)])
        fused = fused_conv_matmul(patches1, w_cat, b_cat, relu_cols=relu_cols)
        out1 = fused[:, :planes]
        shortcut = fused[:, planes:]
    else:
        out1 = fused_conv_matmul(patches1, w1s, b1,
                                 relu_cols=jnp.ones((planes,), bool))
        shortcut = x_nhwc.reshape(M, Cin)     # identity: stride==1, Cin==planes

    # ---- conv2 + bn2 + residual add + relu ----
    out1_nhwc = out1.reshape(n, Ho, Wo, planes)
    patches2, _ = im2col_3x3(out1_nhwc, 1)
    w2 = jnp.transpose(params["w2"], (2, 3, 1, 0)).reshape(9 * planes, planes)
    s2, b2 = fold_bn(**params["bn2"])
    out2 = fused_conv_matmul(patches2, w2 * s2[None, :], b2, residual=shortcut)

    return jnp.transpose(out2.reshape(n, Ho, Wo, planes), (0, 3, 1, 2))


# ----------------------------------------------------------------------------
# Pure-JAX reference (lax.conv) for correctness check
# ----------------------------------------------------------------------------
def _ref_bn(x, bn):
    g, b, m, v = bn["gamma"], bn["beta"], bn["mean"], bn["var"]
    return (g[None, :, None, None] * (x - m[None, :, None, None])
            / jnp.sqrt(v[None, :, None, None] + EPS) + b[None, :, None, None])


def ref_forward(x, params, stride):
    def conv(x, w, s, pad):
        return lax.conv_general_dilated(
            x, w, (s, s), [(pad, pad), (pad, pad)],
            dimension_numbers=("NCHW", "OIHW", "NCHW"))
    out = jax.nn.relu(_ref_bn(conv(x, params["w1"], stride, 1), params["bn1"]))
    out = _ref_bn(conv(out, params["w2"], 1, 1), params["bn2"])
    if params["has_shortcut"]:
        sc = _ref_bn(conv(x, params["ws"], stride, 0), params["bns"])
    else:
        sc = x
    return jax.nn.relu(out + sc)


def _run_case(key, N, in_planes, H, W, planes, stride):
    k_x, k_p = jax.random.split(key)
    x = jax.random.normal(k_x, (N, in_planes, H, W), jnp.float32)
    params = init_basic_block_params(k_p, in_planes, planes, stride)

    out = jax.block_until_ready(basic_block_forward(x, params, stride))
    ref = jax.block_until_ready(ref_forward(x, params, stride))

    Ho, Wo = H // stride, W // stride
    assert out.shape == ref.shape == (N, planes, Ho, Wo)
    err = float(jnp.max(jnp.abs(out - ref)))
    tol = 2e-2 * float(jnp.max(jnp.abs(ref))) + 1e-3   # bf16 matmul inputs
    assert err < tol, f"mismatch vs reference: {err} >= {tol}"


if __name__ == "__main__":
    key = jax.random.PRNGKey(0)
    k1, k2 = jax.random.split(key)

    # Projection-shortcut path (stride=2, channel change) — exercises the
    # fused conv1 + 1x1-shortcut kernel.
    _run_case(k1, N=2, in_planes=4, H=16, W=16, planes=8, stride=2)

    # Identity-shortcut path (stride=1, same channels) — exercises the
    # residual-fused conv2 kernel with an identity residual.
    _run_case(k2, N=2, in_planes=8, H=8, W=8, planes=8, stride=1)

    print("KERNEL_OK")
</pallas_src>

<mosaic_0001>
module attributes {stable_mosaic.version = 11 : i64} {
  func.func @_mm_bn_mask_kernel(%arg0: i32, %arg1: i32, %arg2: i32, %arg3: memref<128x48xbf16, #tpu.memory_space<vmem>>, %arg4: memref<48x128xbf16, #tpu.memory_space<vmem>>, %arg5: memref<1x128xf32, #tpu.memory_space<vmem>>, %arg6: memref<1x128xf32, #tpu.memory_space<vmem>>, %arg7: memref<128x128xf32, #tpu.memory_space<vmem>>, %arg8: memref<128x128xf32, #tpu.memory_space<vmem>>) attributes {dimension_semantics = [#tpu.dimension_semantics<parallel>, #tpu.dimension_semantics<parallel>, #tpu.dimension_semantics<arbitrary>], iteration_bounds = array<i64: 1, 1, 1>, scalar_prefetch = 0 : i64, scratch_operands = 1 : i64, tpu.core_type = #tpu.core_type<tc>, window_params = [{transform_indices = @transform_0, window_bounds = array<i64: 128, 48>}, {transform_indices = @transform_1, window_bounds = array<i64: 48, 128>}, {transform_indices = @transform_2, window_bounds = array<i64: 1, 128>}, {transform_indices = @transform_3, window_bounds = array<i64: 1, 128>}, {transform_indices = @transform_4, window_bounds = array<i64: 128, 128>}]} {
    %c0_i32 = arith.constant 0 : i32
    %0 = arith.cmpi eq, %arg2, %c0_i32 : i32
    %1 = arith.extui %0 : i1 to i32
    %c0_i32_0 = arith.constant 0 : i32
    %2 = arith.cmpi ne, %1, %c0_i32_0 : i32
    scf.if %2 {
      %cst_10 = arith.constant 0.000000e+00 : f32
      %12 = vector.broadcast %cst_10 : f32 to vector<128x128xf32>
      %c0_11 = arith.constant 0 : index
      %c0_12 = arith.constant 0 : index
      %13 = vector.load %arg8[%c0_11, %c0_12] : memref<128x128xf32, #tpu.memory_space<vmem>>, vector<128x128xf32>
      tpu.vector_store %arg8[%c0_11, %c0_12], %12 {strides = array<i32>} : memref<128x128xf32, #tpu.memory_space<vmem>>, vector<128x128xf32>,
    } else {
    }
    %c0 = arith.constant 0 : index
    %c0_1 = arith.constant 0 : index
    %3 = vector.load %arg8[%c0, %c0_1] : memref<128x128xf32, #tpu.memory_space<vmem>>, vector<128x128xf32>
    %c0_2 = arith.constant 0 : index
    %c0_3 = arith.constant 0 : index
    %4 = vector.load %arg3[%c0_2, %c0_3] : memref<128x48xbf16, #tpu.memory_space<vmem>>, vector<128x48xbf16>
    %c0_4 = arith.constant 0 : index
    %c0_5 = arith.constant 0 : index
    %5 = vector.load %arg4[%c0_4, %c0_5] : memref<48x128xbf16, #tpu.memory_space<vmem>>, vector<48x128xbf16>
    %cst = arith.constant dense<0.000000e+00> : vector<128x128xf32>
    %6 = tpu.matmul %4, %5, %cst {dimension_numbers = #tpu.dot_dimension_numbers<[1], [0], [0], [1], [0, 0, 1, 1], [], []>} : vector<128x48xbf16>, vector<48x128xbf16>, vector<128x128xf32> -> vector<128x128xf32>
    %7 = arith.addf %3, %6 : vector<128x128xf32>
    %c0_6 = arith.constant 0 : index
    %c0_7 = arith.constant 0 : index
    %8 = vector.load %arg8[%c0_6, %c0_7] : memref<128x128xf32, #tpu.memory_space<vmem>>, vector<128x128xf32>
    tpu.vector_store %arg8[%c0_6, %c0_7], %7 {strides = array<i32>} : memref<128x128xf32, #tpu.memory_space<vmem>>, vector<128x128xf32>,
    %c0_i32_8 = arith.constant 0 : i32
    %9 = arith.cmpi eq, %arg2, %c0_i32_8 : i32
    %10 = arith.extui %9 : i1 to i32
    %c0_i32_9 = arith.constant 0 : i32
    %11 = arith.cmpi ne, %10, %c0_i32_9 : i32
    scf.if %11 {
      %c0_10 = arith.constant 0 : index
      %c0_11 = arith.constant 0 : index
      %12 = vector.load %arg8[%c0_10, %c0_11] : memref<128x128xf32, #tpu.memory_space<vmem>>, vector<128x128xf32>
      %c0_12 = arith.constant 0 : index
      %c0_13 = arith.constant 0 : index
      %13 = vector.load %arg5[%c0_12, %c0_13] : memref<1x128xf32, #tpu.memory_space<vmem>>, vector<1x128xf32>
      %14 = vector.broadcast %13 : vector<1x128xf32> to vector<128x128xf32>
      %15 = arith.addf %12, %14 : vector<128x128xf32>
      %c0_14 = arith.constant 0 : index
      %c0_15 = arith.constant 0 : index
      %16 = vector.load %arg6[%c0_14, %c0_15] : memref<1x128xf32, #tpu.memory_space<vmem>>, vector<1x128xf32>
      %cst_16 = arith.constant 0.000000e+00 : f32
      %17 = vector.broadcast %cst_16 : f32 to vector<1x128xf32>
      %18 = arith.cmpf ogt, %16, %17 : vector<1x128xf32>
      %cst_17 = arith.constant 0.000000e+00 : f32
      %19 = vector.broadcast %cst_17 : f32 to vector<128x128xf32>
      %20 = arith.maximumf %15, %19 : vector<128x128xf32>
      %21 = vector.shape_cast %18 : vector<1x128xi1> to vector<1x128xi1>
      %22 = vector.broadcast %21 : vector<1x128xi1> to vector<128x128xi1>
      %23 = arith.select %22, %20, %15 : vector<128x128xi1>, vector<128x128xf32>
      %c0_18 = arith.constant 0 : index
      %c0_19 = arith.constant 0 : index
      %24 = vector.load %arg7[%c0_18, %c0_19] : memref<128x128xf32, #tpu.memory_space<vmem>>, vector<128x128xf32>
      tpu.vector_store %arg7[%c0_18, %c0_19], %23 {strides = array<i32>} : memref<128x128xf32, #tpu.memory_space<vmem>>, vector<128x128xf32>,
    } else {
    }
    return
  }
  func.func @transform_0(%arg0: i32, %arg1: i32, %arg2: i32) -> (i32, i32) {
    %c0_i32 = arith.constant 0 : i32
    return %arg0, %arg2 : i32, i32
  }
  func.func @transform_1(%arg0: i32, %arg1: i32, %arg2: i32) -> (i32, i32) {
    %c0_i32 = arith.constant 0 : i32
    return %arg2, %arg1 : i32, i32
  }
  func.func @transform_2(%arg0: i32, %arg1: i32, %arg2: i32) -> (i32, i32) {
    %c0_i32 = arith.constant 0 : i32
    %c0_i32_0 = arith.constant 0 : i32
    return %c0_i32, %arg1 : i32, i32
  }
  func.func @transform_3(%arg0: i32, %arg1: i32, %arg2: i32) -> (i32, i32) {
    %c0_i32 = arith.constant 0 : i32
    %c0_i32_0 = arith.constant 0 : i32
    return %c0_i32, %arg1 : i32, i32
  }
  func.func @transform_4(%arg0: i32, %arg1: i32, %arg2: i32) -> (i32, i32) {
    %c0_i32 = arith.constant 0 : i32
    return %arg0, %arg1 : i32, i32
  }
}

</mosaic_0001>

<llo_original>
// kernel: tpu_custom_call.1
$region0: #{tpu_custom_call.1}
  #allocation0 [shape = 'u32[]', space=smem, size = 0x4, offset = 0x4, fixed_abs, tag = 'smem constant byte address 0x4 - core index']
  #allocation1 [shape = 'u32[144,128]{1,0:T(1,128)}', space=vmem, size = 0x12000, scoped, tag = 'internal scratch']
  #allocation2 [shape = 'f32[128,128]{1,0:T(8,128)}', space=vmem, size = 0x10000, scoped, tag = 'scratch operand']
  %s0 = inlined_call_operand.vmem [shape: bf16[128,48], index: 0, kind: input, shape index: {}]
  %s1 = inlined_call_operand.vmem [shape: bf16[48,128], index: 1, kind: input, shape index: {}]
  %s2 = inlined_call_operand.vmem [shape: f32[1,128], index: 2, kind: input, shape index: {}]
  %s3 = inlined_call_operand.vmem [shape: f32[1,128], index: 3, kind: input, shape index: {}]
  %s4 = inlined_call_operand.hbm [shape: f32[128,128], index: 4, kind: output, shape index: {}]
  %s5 = sld [smem:[#allocation0]]
  $region34: #{tpu_custom_call.1} parent=0
    _
  %s7 = ssub.s32 1, %s5
  %s8 = scalar_select 0, %s7, %s5
  $region1: #{tpu_custom_call.1} parent=0
    #allocation3 [shape = 'u8[65536]{0}', space=vmem, size = 0x10000, scoped, tag = 'output window, operand 0, single buffered']
    #allocation4 [shape = 's32[1]{0}', space=sflag, size = 0x4, scoped, tag = 'scoped memory for tpu_custom_call.1']
    %9 = vsyncpa [#allocation4], 0
    // Predicated region
    $region2: #{tpu_custom_call.1} parent=1 // pred_check
      _
    $region3: #{tpu_custom_call.1} parent=1 // pred_check_branch
      %11 = sbr.rel (0) target = $region5
    $region4: #{tpu_custom_call.1} parent=1 // pred_region
      _
    $region5: #{tpu_custom_call.1} parent=1 // pred_fallthru
      _
    // Predicated region
    $region6: #{tpu_custom_call.1} parent=1 // pred_check
      _
    $region7: #{tpu_custom_call.1} parent=1 // pred_check_branch
      %13 = sbr.rel (0) target = $region9
    $region8: #{tpu_custom_call.1} parent=1 // pred_region
      _
    $region9: #{tpu_custom_call.1} parent=1 // pred_fallthru
      _
    // Predicated region
    $region10: #{tpu_custom_call.1} parent=1 // pred_check
      _
    $region11: #{tpu_custom_call.1} parent=1 // pred_check_branch
      %15 = sbr.rel (0) target = $region13
    $region12: #{tpu_custom_call.1} parent=1 // pred_region
      _
    $region13: #{tpu_custom_call.1} parent=1 // pred_fallthru
      _
    // Predicated region
    $region14: #{tpu_custom_call.1} parent=1 // pred_check
      _
    $region15: #{tpu_custom_call.1} parent=1 // pred_check_branch
      %17 = sbr.rel (0) target = $region17
    $region16: #{tpu_custom_call.1} parent=1 // pred_region
      _
    $region17: #{tpu_custom_call.1} parent=1 // pred_fallthru
      _
    %p19 = scmp.eq.s32.totalorder 0, 0
    // Predicated region
    $region18: #{tpu_custom_call.1} parent=1 // pred_check
      %p20 = pneg %p19
    $region19: #{tpu_custom_call.1} parent=1 // pred_check_branch
      %22 = sbr.rel (%p20) target = $region21
    $region20: #{tpu_custom_call.1} parent=1 // pred_region
      %23 = vst [vmem:[#allocation2] sm:$0xff] 0.0
      %24 = vst [vmem:[#allocation2 + $0x8] sm:$0xff] 0.0
      %25 = vst [vmem:[#allocation2 + $0x10] sm:$0xff] 0.0
      %26 = vst [vmem:[#allocation2 + $0x18] sm:$0xff] 0.0
      %27 = vst [vmem:[#allocation2 + $0x20] sm:$0xff] 0.0
      %28 = vst [vmem:[#allocation2 + $0x28] sm:$0xff] 0.0
      %29 = vst [vmem:[#allocation2 + $0x30] sm:$0xff] 0.0
      %30 = vst [vmem:[#allocation2 + $0x38] sm:$0xff] 0.0
      %31 = vst [vmem:[#allocation2 + $0x40] sm:$0xff] 0.0
      %32 = vst [vmem:[#allocation2 + $0x48] sm:$0xff] 0.0
      %33 = vst [vmem:[#allocation2 + $0x50] sm:$0xff] 0.0
      %34 = vst [vmem:[#allocation2 + $0x58] sm:$0xff] 0.0
      %35 = vst [vmem:[#allocation2 + $0x60] sm:$0xff] 0.0
      %36 = vst [vmem:[#allocation2 + $0x68] sm:$0xff] 0.0
      %37 = vst [vmem:[#allocation2 + $0x70] sm:$0xff] 0.0
      %38 = vst [vmem:[#allocation2 + $0x78] sm:$0xff] 0.0
    $region21: #{tpu_custom_call.1} parent=1 // pred_fallthru
      _
    %v39 = vld [vmem:[#allocation2] sm:$0xff]
    %v40 = vld [vmem:[#allocation2 + $0x8] sm:$0xff]
    %v41 = vld [vmem:[#allocation2 + $0x10] sm:$0xff]
    %v42 = vld [vmem:[#allocation2 + $0x18] sm:$0xff]
    %v43 = vld [vmem:[#allocation2 + $0x20] sm:$0xff]
    %v44 = vld [vmem:[#allocation2 + $0x28] sm:$0xff]
    %v45 = vld [vmem:[#allocation2 + $0x30] sm:$0xff]
    %v46 = vld [vmem:[#allocation2 + $0x38] sm:$0xff]
    %v47 = vld [vmem:[#allocation2 + $0x40] sm:$0xff]
    %v48 = vld [vmem:[#allocation2 + $0x48] sm:$0xff]
    %v49 = vld [vmem:[#allocation2 + $0x50] sm:$0xff]
    %v50 = vld [vmem:[#allocation2 + $0x58] sm:$0xff]
    %v51 = vld [vmem:[#allocation2 + $0x60] sm:$0xff]
    %v52 = vld [vmem:[#allocation2 + $0x68] sm:$0xff]
    %v53 = vld [vmem:[#allocation2 + $0x70] sm:$0xff]
    %v54 = vld [vmem:[#allocation2 + $0x78] sm:$0xff]
    %v55 = vld [vmem:[%s0] sm:$0xf]
    %v56 = vld [vmem:[%s0 + $0x4] sm:$0xf]
    %v57 = vld [vmem:[%s0 + $0x8] sm:$0xf]
    %v58 = vld [vmem:[%s0 + $0xc] sm:$0xf]
    %v59 = vld [vmem:[%s0 + $0x10] sm:$0xf]
    %v60 = vld [vmem:[%s0 + $0x14] sm:$0xf]
    %v61 = vld [vmem:[%s0 + $0x18] sm:$0xf]
    %v62 = vld [vmem:[%s0 + $0x1c] sm:$0xf]
    %v63 = vld [vmem:[%s0 + $0x20] sm:$0xf]
    %v64 = vld [vmem:[%s0 + $0x24] sm:$0xf]
    %v65 = vld [vmem:[%s0 + $0x28] sm:$0xf]
    %v66 = vld [vmem:[%s0 + $0x2c] sm:$0xf]
    %v67 = vld [vmem:[%s0 + $0x30] sm:$0xf]
    %v68 = vld [vmem:[%s0 + $0x34] sm:$0xf]
    %v69 = vld [vmem:[%s0 + $0x38] sm:$0xf]
    %v70 = vld [vmem:[%s0 + $0x3c] sm:$0xf]
    %v71 = vld [vmem:[%s1] sm:$0xf]
    %v72 = vld [vmem:[%s1 + $0x4] sm:$0xf]
    %v73 = vld [vmem:[%s1 + $0x8] sm:$0xf]
    %v74 = vld [vmem:[%s1 + $0xc] sm:$0xf]
    %v75 = vld [vmem:[%s1 + $0x10] sm:$0xf]
    %v76 = vld [vmem:[%s1 + $0x14] sm:$0xf]
    %v93 = vunpack.c.l.b16 %v55
    %v94 = vunpack.c.l.b16 %v56
    %v95 = vunpack.c.l.b16 %v57
    %v96 = vunpack.c.l.b16 %v58
    %v97 = vunpack.c.l.b16 %v59
    %v98 = vunpack.c.l.b16 %v60
    %v99 = vunpack.c.l.b16 %v61
    %v100 = vunpack.c.l.b16 %v62
    %v101 = vunpack.c.l.b16 %v63
    %v102 = vunpack.c.l.b16 %v64
    %v103 = vunpack.c.l.b16 %v65
    %v104 = vunpack.c.l.b16 %v66
    %v105 = vunpack.c.l.b16 %v67
    %v106 = vunpack.c.l.b16 %v68
    %v107 = vunpack.c.l.b16 %v69
    %v108 = vunpack.c.l.b16 %v70
    %v109 = vpack.c.b16 %v94, %v93
    %v110 = vpack.c.b16 %v96, %v95
    %v111 = vpack.c.b16 %v98, %v97
    %v112 = vpack.c.b16 %v100, %v99
    %v113 = vpack.c.b16 %v102, %v101
    %v114 = vpack.c.b16 %v104, %v103
    %v115 = vpack.c.b16 %v106, %v105
    %v116 = vpack.c.b16 %v108, %v107
    %v123 = vunpack.c.l.b16 %v71
    %v124 = vunpack.c.l.b16 %v72
    %v125 = vunpack.c.l.b16 %v73
    %v126 = vunpack.c.l.b16 %v74
    %v127 = vunpack.c.l.b16 %v75
    %v128 = vunpack.c.l.b16 %v76
    %v129 = vpack.c.b16 %v124, %v123
    %v130 = vpack.c.b16 %v126, %v125
    %v131 = vpack.c.b16 %v128, %v127
    %vm135 = vcmask 392192
    %v137 = vsel %vm135, %v109, 0
    %v140 = vsel %vm135, %v110, 0
    %v143 = vsel %vm135, %v111, 0
    %v146 = vsel %vm135, %v112, 0
    %v149 = vsel %vm135, %v113, 0
    %v152 = vsel %vm135, %v114, 0
    %v155 = vsel %vm135, %v115, 0
    %v158 = vsel %vm135, %v116, 0
    %160 = vmatprep.subr.bf16.mxu0 0
    %161 = vmatpush1.bf16.msra.mxu0 %v129
    %162 = vmatprep.subr.bf16.mxu0 0
    %163 = vmatpush1.bf16.msra.mxu0 %v130
    %164 = vmatprep.subr.bf16.mxu0 0
    %165 = vmatpush1.bf16.msra.mxu0 %v131
    %166 = vmatprep.subr.bf16.mxu0 0
    %167 = vmatpush1.bf16.msra.mxu0 0
    %168 = vmatprep.subr.bf16.mxu0 0
    %169 = vmatpush1.bf16.msra.mxu0 0
    %170 = vmatprep.subr.bf16.mxu0 0
    %171 = vmatpush1.bf16.msra.mxu0 0
    %172 = vmatprep.subr.bf16.mxu0 0
    %173 = vmatpush1.bf16.msra.mxu0 0
    %174 = vmatprep.subr.bf16.mxu0 0
    %175 = vmatpush1.bf16.msra.mxu0 0
    %176 = vmatprep.subr.bf16.mxu0 0
    %177 = vmatpush1.bf16.msra.mxu0 0
    %178 = vmatprep.subr.bf16.mxu0 0
    %179 = vmatpush1.bf16.msra.mxu0 0
    %180 = vmatprep.subr.bf16.mxu0 0
    %181 = vmatpush1.bf16.msra.mxu0 0
    %182 = vmatprep.subr.bf16.mxu0 0
    %183 = vmatpush1.bf16.msra.mxu0 0
    %184 = vmatprep.subr.bf16.mxu0 0
    %185 = vmatpush1.bf16.msra.mxu0 0
    %186 = vmatprep.subr.bf16.mxu0 0
    %187 = vmatpush1.bf16.msra.mxu0 0
    %188 = vmatprep.subr.bf16.mxu0 0
    %189 = vmatpush1.bf16.msra.mxu0 0
    %190 = vmatprep.subr.bf16.mxu0 0
    %191 = vmatpush1.bf16.msra.mxu0 0
    %192 = vmatprep.mubr.bf16.mxu0 0
    %193 = vmatmul.mubr.bf16.gmra.mrb[0].mxu0 %v137
    %v194 = vpop.f32.mrb[0].mxu0
    %v195 = vadd.f32 0.0, %v194
    %v196 = vpop.f32.mrb[0].mxu0
    %v197 = vpop.f32.mrb[0].mxu0
    %v198 = vadd.f32 0.0, %v197
    %v199 = vpop.f32.mrb[0].mxu0
    %200 = vmatprep.mubr.bf16.mxu0 0
    %201 = vmatmul.mubr.bf16.gmra.mrb[0].mxu0 %v140
    %v202 = vpop.f32.mrb[0].mxu0
    %v203 = vadd.f32 0.0, %v202
    %v204 = vpop.f32.mrb[0].mxu0
    %v205 = vpop.f32.mrb[0].mxu0
    %v206 = vadd.f32 0.0, %v205
    %v207 = vpop.f32.mrb[0].mxu0
    %208 = vmatprep.mubr.bf16.mxu0 0
    %209 = vmatmul.mubr.bf16.gmra.mrb[0].mxu0 %v143
    %v210 = vpop.f32.mrb[0].mxu0
    %v211 = vadd.f32 0.0, %v210
    %v212 = vpop.f32.mrb[0].mxu0
    %v213 = vpop.f32.mrb[0].mxu0
    %v214 = vadd.f32 0.0, %v213
    %v215 = vpop.f32.mrb[0].mxu0
    %216 = vmatprep.mubr.bf16.mxu0 0
    %217 = vmatmul.mubr.bf16.gmra.mrb[0].mxu0 %v146
    %v218 = vpop.f32.mrb[0].mxu0
    %v219 = vadd.f32 0.0, %v218
    %v220 = vpop.f32.mrb[0].mxu0
    %v221 = vpop.f32.mrb[0].mxu0
    %v222 = vadd.f32 0.0, %v221
    %v223 = vpop.f32.mrb[0].mxu0
    %224 = vmatprep.mubr.bf16.mxu0 0
    %225 = vmatmul.mubr.bf16.gmra.mrb[0].mxu0 %v149
    %v226 = vpop.f32.mrb[0].mxu0
    %v227 = vadd.f32 0.0, %v226
    %v228 = vpop.f32.mrb[0].mxu0
    %v229 = vpop.f32.mrb[0].mxu0
    %v230 = vadd.f32 0.0, %v229
    %v231 = vpop.f32.mrb[0].mxu0
    %232 = vmatprep.mubr.bf16.mxu0 0
    %233 = vmatmul.mubr.bf16.gmra.mrb[0].mxu0 %v152
    %v234 = vpop.f32.mrb[0].mxu0
    %v235 = vadd.f32 0.0, %v234
    %v236 = vpop.f32.mrb[0].mxu0
    %v237 = vpop.f32.mrb[0].mxu0
    %v238 = vadd.f32 0.0, %v237
    %v239 = vpop.f32.mrb[0].mxu0
    %240 = vmatprep.mubr.bf16.mxu0 0
    %241 = vmatmul.mubr.bf16.gmra.mrb[0].mxu0 %v155
    %v242 = vpop.f32.mrb[0].mxu0
    %v243 = vadd.f32 0.0, %v242
    %v244 = vpop.f32.mrb[0].mxu0
    %v245 = vpop.f32.mrb[0].mxu0
    %v246 = vadd.f32 0.0, %v245
    %v247 = vpop.f32.mrb[0].mxu0
    %248 = vmatprep.mubr.bf16.mxu0 0
    %249 = vmatmul.mubr.bf16.gmra.mrb[0].mxu0 %v158
    %v250 = vpop.f32.mrb[0].mxu0
    %v251 = vadd.f32 0.0, %v250
    %v252 = vpop.f32.mrb[0].mxu0
    %v253 = vpop.f32.mrb[0].mxu0
    %v254 = vadd.f32 0.0, %v253
    %v255 = vpop.f32.mrb[0].mxu0
    %256 = vdwg.mxu0
    %v257 = vadd.f32 %v39, %v195
    %v258 = vadd.f32 %v40, %v198
    %v259 = vadd.f32 %v41, %v203
    %v260 = vadd.f32 %v42, %v206
    %v261 = vadd.f32 %v43, %v211
    %v262 = vadd.f32 %v44, %v214
    %v263 = vadd.f32 %v45, %v219
    %v264 = vadd.f32 %v46, %v222
    %v265 = vadd.f32 %v47, %v227
    %v266 = vadd.f32 %v48, %v230
    %v267 = vadd.f32 %v49, %v235
    %v268 = vadd.f32 %v50, %v238
    %v269 = vadd.f32 %v51, %v243
    %v270 = vadd.f32 %v52, %v246
    %v271 = vadd.f32 %v53, %v251
    %v272 = vadd.f32 %v54, %v254
    %273 = vst [vmem:[#allocation2] sm:$0xff] %v257
    %274 = vst [vmem:[#allocation2 + $0x8] sm:$0xff] %v258
    %275 = vst [vmem:[#allocation2 + $0x10] sm:$0xff] %v259
    %276 = vst [vmem:[#allocation2 + $0x18] sm:$0xff] %v260
    %277 = vst [vmem:[#allocation2 + $0x20] sm:$0xff] %v261
    %278 = vst [vmem:[#allocation2 + $0x28] sm:$0xff] %v262
    %279 = vst [vmem:[#allocation2 + $0x30] sm:$0xff] %v263
    %280 = vst [vmem:[#allocation2 + $0x38] sm:$0xff] %v264
    %281 = vst [vmem:[#allocation2 + $0x40] sm:$0xff] %v265
    %282 = vst [vmem:[#allocation2 + $0x48] sm:$0xff] %v266
    %283 = vst [vmem:[#allocation2 + $0x50] sm:$0xff] %v267
    %284 = vst [vmem:[#allocation2 + $0x58] sm:$0xff] %v268
    %285 = vst [vmem:[#allocation2 + $0x60] sm:$0xff] %v269
    %286 = vst [vmem:[#allocation2 + $0x68] sm:$0xff] %v270
    %287 = vst [vmem:[#allocation2 + $0x70] sm:$0xff] %v271
    %288 = vst [vmem:[#allocation2 + $0x78] sm:$0xff] %v272
    // Predicated region
    $region22: #{tpu_custom_call.1} parent=1 // pred_check
      %p289 = pneg %p19
    $region23: #{tpu_custom_call.1} parent=1 // pred_check_branch
      %291 = sbr.rel (%p289) target = $region25
    $region24: #{tpu_custom_call.1} parent=1 // pred_region
      %v292 = vld [vmem:[#allocation2] sm:$0xff]
      %v293 = vld [vmem:[#allocation2 + $0x8] sm:$0xff]
      %v294 = vld [vmem:[#allocation2 + $0x10] sm:$0xff]
      %v295 = vld [vmem:[#allocation2 + $0x18] sm:$0xff]
      %v296 = vld [vmem:[#allocation2 + $0x20] sm:$0xff]
      %v297 = vld [vmem:[#allocation2 + $0x28] sm:$0xff]
      %v298 = vld [vmem:[#allocation2 + $0x30] sm:$0xff]
      %v299 = vld [vmem:[#allocation2 + $0x38] sm:$0xff]
      %v300 = vld [vmem:[#allocation2 + $0x40] sm:$0xff]
      %v301 = vld [vmem:[#allocation2 + $0x48] sm:$0xff]
      %v302 = vld [vmem:[#allocation2 + $0x50] sm:$0xff]
      %v303 = vld [vmem:[#allocation2 + $0x58] sm:$0xff]
      %v304 = vld [vmem:[#allocation2 + $0x60] sm:$0xff]
      %v305 = vld [vmem:[#allocation2 + $0x68] sm:$0xff]
      %v306 = vld [vmem:[#allocation2 + $0x70] sm:$0xff]
      %v307 = vld [vmem:[#allocation2 + $0x78] sm:$0xff]
      %v308 = vld [vmem:[%s2] sm:$0x1]
      %v310 = vlaneseq
      %v311 = vshrl.u32 %v310, 7
      %v312 = vsub.s32 0, %v311
      %v313 = vrot.slane %v308, %v312
      %v315 = vadd.f32 %v292, %v313
      %v316 = vadd.f32 %v293, %v313
      %v317 = vadd.f32 %v294, %v313
      %v318 = vadd.f32 %v295, %v313
      %v319 = vadd.f32 %v296, %v313
      %v320 = vadd.f32 %v297, %v313
      %v321 = vadd.f32 %v298, %v313
      %v322 = vadd.f32 %v299, %v313
      %v323 = vadd.f32 %v300, %v313
      %v324 = vadd.f32 %v301, %v313
      %v325 = vadd.f32 %v302, %v313
      %v326 = vadd.f32 %v303, %v313
      %v327 = vadd.f32 %v304, %v313
      %v328 = vadd.f32 %v305, %v313
      %v329 = vadd.f32 %v306, %v313
      %v330 = vadd.f32 %v307, %v313
      %v331 = vld [vmem:[%s3] sm:$0x1]
      %vm332 = vcmp.gt.f32.partialorder %v331, 0.0
      %v333 = vmax.f32 %v315, 0.0
      %v334 = vmax.f32 %v316, 0.0
      %v335 = vmax.f32 %v317, 0.0
      %v336 = vmax.f32 %v318, 0.0
      %v337 = vmax.f32 %v319, 0.0
      %v338 = vmax.f32 %v320, 0.0
      %v339 = vmax.f32 %v321, 0.0
      %v340 = vmax.f32 %v322, 0.0
      %v341 = vmax.f32 %v323, 0.0
      %v342 = vmax.f32 %v324, 0.0
      %v343 = vmax.f32 %v325, 0.0
      %v344 = vmax.f32 %v326, 0.0
      %v345 = vmax.f32 %v327, 0.0
      %v346 = vmax.f32 %v328, 0.0
      %v347 = vmax.f32 %v329, 0.0
      %v348 = vmax.f32 %v330, 0.0
      %v349 = vsel %vm332, 1, 0
      %v350 = vlaneseq
      %v351 = vshrl.u32 %v350, 7
      %v352 = vsub.s32 0, %v351
      %v353 = vrot.slane %v349, %v352
      %vm354 = vcmp.eq.s32.totalorder %v353, 1
      %v355 = vsel %vm354, %v333, %v315
      %v356 = vsel %vm354, %v334, %v316
      %v357 = vsel %vm354, %v335, %v317
      %v358 = vsel %vm354, %v336, %v318
      %v359 = vsel %vm354, %v337, %v319
      %v360 = vsel %vm354, %v338, %v320
      %v361 = vsel %vm354, %v339, %v321
      %v362 = vsel %vm354, %v340, %v322
      %v363 = vsel %vm354, %v341, %v323
      %v364 = vsel %vm354, %v342, %v324
      %v365 = vsel %vm354, %v343, %v325
      %v366 = vsel %vm354, %v344, %v326
      %v367 = vsel %vm354, %v345, %v327
      %v368 = vsel %vm354, %v346, %v328
      %v369 = vsel %vm354, %v347, %v329
      %v370 = vsel %vm354, %v348, %v330
      %371 = vst [vmem:[#allocation3] sm:$0xff] %v355
      %372 = vst [vmem:[#allocation3 + $0x8] sm:$0xff] %v356
      %373 = vst [vmem:[#allocation3 + $0x10] sm:$0xff] %v357
      %374 = vst [vmem:[#allocation3 + $0x18] sm:$0xff] %v358
      %375 = vst [vmem:[#allocation3 + $0x20] sm:$0xff] %v359
      %376 = vst [vmem:[#allocation3 + $0x28] sm:$0xff] %v360
      %377 = vst [vmem:[#allocation3 + $0x30] sm:$0xff] %v361
      %378 = vst [vmem:[#allocation3 + $0x38] sm:$0xff] %v362
      %379 = vst [vmem:[#allocation3 + $0x40] sm:$0xff] %v363
      %380 = vst [vmem:[#allocation3 + $0x48] sm:$0xff] %v364
      %381 = vst [vmem:[#allocation3 + $0x50] sm:$0xff] %v365
      %382 = vst [vmem:[#allocation3 + $0x58] sm:$0xff] %v366
      %383 = vst [vmem:[#allocation3 + $0x60] sm:$0xff] %v367
      %384 = vst [vmem:[#allocation3 + $0x68] sm:$0xff] %v368
      %385 = vst [vmem:[#allocation3 + $0x70] sm:$0xff] %v369
      %386 = vst [vmem:[#allocation3 + $0x78] sm:$0xff] %v370
    $region25: #{tpu_custom_call.1} parent=1 // pred_fallthru
      _
    // Predicated region
    $region26: #{tpu_custom_call.1} parent=1 // pred_check
      _
    $region27: #{tpu_custom_call.1} parent=1 // pred_check_branch
      %388 = sbr.rel (0) target = $region29
    $region28: #{tpu_custom_call.1} parent=1 // pred_region
      %s390 = ssub.s32 2048, 2048
      %391 = vsyncadd [#allocation4], %s390
      %s392 = sshll.u32 [#allocation3], 4
      %s393 = int_to_ptr.vmem [resolvable:$true] %s392
      %398 = dma.vmem_to_hbm [thread:$0]  %s393, 2048, %s4, [#allocation4], 128, 128, 8
    $region29: #{tpu_custom_call.1} parent=1 // pred_fallthru
      _
    // Predicated region
    $region30: #{tpu_custom_call.1} parent=1 // pred_check
      _
    $region31: #{tpu_custom_call.1} parent=1 // pred_check_branch
      %400 = sbr.rel (0) target = $region33
    $region32: #{tpu_custom_call.1} parent=1 // pred_region
      %401 = dma.done [#allocation4], 2048
    $region33: #{tpu_custom_call.1} parent=1 // pred_fallthru
      _
    %402 = vsyncpa [#allocation4], 1

</llo_original>
